<compile_context>
chip_gen: v7x
topology: tpu7x:2x2x1
jax: 0.10.0
libtpu: 0.0.40
codegen_flags: <defaults>
</compile_context>

<pallas_src>
import functools
import math

import jax
import jax.numpy as jnp
from jax.experimental import pallas as pl
from jax.experimental.pallas import tpu as pltpu


def build_pe_table(max_sequence_length: int, dimension: int) -> jnp.ndarray:
    """Replicates the PyTorch double loop filling `mat` (shape [L, D])."""
    assert dimension % 2 == 0, "PositionalEncoder requires an even dimension"
    pos = jnp.arange(max_sequence_length, dtype=jnp.float32)[:, None]     # (L, 1)
    i_even = jnp.arange(0, dimension, 2, dtype=jnp.float32)[None, :]      # (1, D/2)
    # even cols: sin(pos / 10000**(2*i/D)); odd cols: cos(pos / 10000**(2*(i+1)/D))
    sin_part = jnp.sin(pos / jnp.power(10000.0, 2.0 * i_even / dimension))
    cos_part = jnp.cos(pos / jnp.power(10000.0, 2.0 * (i_even + 1.0) / dimension))
    mat = jnp.stack([sin_part, cos_part], axis=-1).reshape(
        max_sequence_length, dimension
    )
    return mat.astype(jnp.float32)


def _pe_add_kernel(x_ref, pe_ref, o_ref, *, scale):
    # x_ref : (TB, TC)   row/col tile of the folded activations
    # pe_ref: (S_r, TC)  matching f32 PE slice; rows repeat every S_r activations
    # o_ref : (TB, TC)
    x = x_ref[...].astype(jnp.float32)
    pe = pe_ref[...]
    reps = x.shape[0] // pe.shape[0]
    if pe.shape[0] > 1 and reps > 1:
        # Sublane repeat so PE rows line up with the (tb)-row activation tile.
        pe = jnp.tile(pe, (reps, 1))
    o_ref[...] = (x * scale + pe).astype(o_ref.dtype)


def _pick_seq_fold(B: int, S: int) -> int:
    """Pick S_r in {1,2,4,8} dividing S: smallest with B*S_r % 8 == 0, else largest."""
    cands = [s for s in (1, 2, 4, 8) if S % s == 0]
    good = [s for s in cands if (B * s) % 8 == 0]
    return min(good) if good else max(cands)


def _pick_col_tile(cols, tb, itemsize, target_bytes, row_blocks, min_total_blocks=4):
    """Column tile: lane-dense multiple of 128, capped at target_bytes per x tile."""
    if cols <= 128:
        return cols                                   # full extent: always legal
    by_bytes = max(128, (target_bytes // (tb * itemsize)) // 128 * 128)
    tc = min((cols // 128) * 128, by_bytes)
    # v7x occupancy: prefer enough grid blocks so both TensorCores get work.
    while row_blocks * pl.cdiv(cols, tc) < min_total_blocks and tc > 128:
        tc = max(128, (tc // 2) // 128 * 128)
    return tc


@functools.partial(jax.jit, static_argnames=("target_tile_bytes",))
def positional_encoder(x, pe_table, *, target_tile_bytes=2 * 1024 * 1024):
    """x: (B, S, D); pe_table: (L, D) f32 with L >= S. Returns x*sqrt(D) + pe[:S]."""
    B, S, D = x.shape
    L, Dt = pe_table.shape
    assert Dt == D and L >= S, "pe_table must cover at least (S, D)"
    scale = math.sqrt(D)
    itemsize = jnp.dtype(x.dtype).itemsize

    # Fold part of the sequence into rows so rows fill 8 sublanes for small B.
    s_r = _pick_seq_fold(B, S)
    s_c = S // s_r
    rows, cols = B * s_r, s_c * D
    x2 = x.reshape(rows, cols)
    pe2 = pe_table[:S, :].reshape(s_r, cols)          # keep PE in f32 end-to-end

    # Row tile: dtype-aware sublane fill (8 f32 / 16 bf16 / 32 int8 rows).
    sub = 8 * max(1, 4 // itemsize)
    tb = sub if rows >= sub else rows                 # full extent when rows < sub
    row_blocks = pl.cdiv(rows, tb)
    tc = _pick_col_tile(cols, tb, itemsize, target_tile_bytes, row_blocks)
    col_blocks = pl.cdiv(cols, tc)

    grid = (col_blocks, row_blocks)                   # rows innermost: PE stays put

    kernel = functools.partial(_pe_add_kernel, scale=scale)

    out2 = pl.pallas_call(
        kernel,
        out_shape=jax.ShapeDtypeStruct((rows, cols), x.dtype),
        grid_spec=pltpu.PrefetchScalarGridSpec(
            num_scalar_prefetch=0,
            grid=grid,
            in_specs=[
                pl.BlockSpec((tb, tc), lambda c, r: (r, c)),   # activations tile
                pl.BlockSpec((s_r, tc), lambda c, r: (0, c)),  # PE slice (const in r)
            ],
            out_specs=pl.BlockSpec((tb, tc), lambda c, r: (r, c)),
        ),
        compiler_params=pltpu.CompilerParams(
            dimension_semantics=("parallel", "parallel"),
        ),
        cost_estimate=pl.CostEstimate(
            flops=2 * rows * cols,
            transcendentals=0,
            bytes_accessed=2 * rows * cols * itemsize + s_r * cols * 4,
        ),
        input_output_aliases={0: 0},                  # x2 donated to the output
    )(x2, pe2)

    return out2.reshape(B, S, D)


if __name__ == "__main__":
    # Small shapes consistent with the module: batch=2, seq=8, dimension=32
    B, S, D = 2, 8, 32
    MAX_LEN = 200

    key = jax.random.PRNGKey(0)
    x = jax.random.normal(key, (B, S, D), dtype=jnp.float32)

    pe_table = build_pe_table(MAX_LEN, D)

    out = positional_encoder(x, pe_table)
    out = jax.block_until_ready(out)

    # Sanity check against the plain-JAX reference of the forward pass.
    ref = x * math.sqrt(D) + pe_table[:S, :][None, :, :]
    assert out.shape == (B, S, D)
    assert jnp.allclose(out, ref, atol=1e-5, rtol=1e-5), "mismatch vs reference"

    print("KERNEL_OK")
</pallas_src>

<mosaic_0001>
module attributes {stable_mosaic.version = 11 : i64} {
  func.func @_pe_add_kernel(%arg0: i32, %arg1: i32, %arg2: memref<8x64xf32, #tpu.memory_space<vmem>>, %arg3: memref<4x64xf32, #tpu.memory_space<vmem>>, %arg4: memref<8x64xf32, #tpu.memory_space<vmem>>) attributes {dimension_semantics = [#tpu.dimension_semantics<parallel>, #tpu.dimension_semantics<parallel>], iteration_bounds = array<i64: 1, 1>, scalar_prefetch = 0 : i64, scratch_operands = 0 : i64, tpu.core_type = #tpu.core_type<tc>, window_params = [{transform_indices = @transform_0, window_bounds = array<i64: 8, 64>}, {transform_indices = @transform_1, window_bounds = array<i64: 4, 64>}, {transform_indices = @transform_2, window_bounds = array<i64: 8, 64>}]} {
    %c0 = arith.constant 0 : index
    %c0_0 = arith.constant 0 : index
    %0 = vector.load %arg2[%c0, %c0_0] : memref<8x64xf32, #tpu.memory_space<vmem>>, vector<8x64xf32>
    %c0_1 = arith.constant 0 : index
    %c0_2 = arith.constant 0 : index
    %1 = vector.load %arg3[%c0_1, %c0_2] : memref<4x64xf32, #tpu.memory_space<vmem>>, vector<4x64xf32>
    %2 = tpu.concatenate %1, %1 in 0 : vector<4x64xf32>, vector<4x64xf32> -> vector<8x64xf32>
    %cst = arith.constant 5.65685415 : f32
    %3 = vector.broadcast %cst : f32 to vector<8x64xf32>
    %4 = arith.mulf %0, %3 : vector<8x64xf32>
    %5 = arith.addf %4, %2 : vector<8x64xf32>
    %c0_3 = arith.constant 0 : index
    %c0_4 = arith.constant 0 : index
    %6 = vector.load %arg4[%c0_3, %c0_4] : memref<8x64xf32, #tpu.memory_space<vmem>>, vector<8x64xf32>
    tpu.vector_store %arg4[%c0_3, %c0_4], %5 {strides = array<i32>} : memref<8x64xf32, #tpu.memory_space<vmem>>, vector<8x64xf32>,
    return
  }
  func.func @transform_0(%arg0: i32, %arg1: i32) -> (i32, i32) {
    %c0_i32 = arith.constant 0 : i32
    return %arg1, %arg0 : i32, i32
  }
  func.func @transform_1(%arg0: i32, %arg1: i32) -> (i32, i32) {
    %c0_i32 = arith.constant 0 : i32
    %c0_i32_0 = arith.constant 0 : i32
    return %c0_i32, %arg0 : i32, i32
  }
  func.func @transform_2(%arg0: i32, %arg1: i32) -> (i32, i32) {
    %c0_i32 = arith.constant 0 : i32
    return %arg1, %arg0 : i32, i32
  }
}

</mosaic_0001>

<llo_original>
// kernel: positional_encoder.1
$region0: #{positional_encoder.1}
  #allocation0 [shape = 'u32[]', space=smem, size = 0x4, offset = 0x4, fixed_abs, tag = 'smem constant byte address 0x4 - core index']
  #allocation1 [shape = 'u32[144,128]{1,0:T(1,128)}', space=vmem, size = 0x12000, scoped, tag = 'internal scratch']
  %s0 = inlined_call_operand.vmem [shape: f32[8,64], index: 0, kind: input, shape index: {}, may-alias: {0,2}]
  %s1 = inlined_call_operand.vmem [shape: f32[4,64], index: 1, kind: input, shape index: {}]
  %s2 = inlined_call_operand.vmem [shape: f32[8,64], index: 2, kind: output, shape index: {}, may-alias: {0,2}]
  %s3 = sld [smem:[#allocation0]]
  $region18: #{positional_encoder.1} parent=0
    _
  %s5 = ssub.s32 1, %s3
  %s6 = scalar_select 0, %s5, %s3
  // Predicated region
  $region2: #{positional_encoder.1} parent=0 // pred_check
    _
  $region3: #{positional_encoder.1} parent=0 // pred_check_branch
    %8 = sbr.rel (0) target = $region5
  $region4: #{positional_encoder.1} parent=0 // pred_region
    _
  $region5: #{positional_encoder.1} parent=0 // pred_fallthru
    _
  // Predicated region
  $region6: #{positional_encoder.1} parent=0 // pred_check
    _
  $region7: #{positional_encoder.1} parent=0 // pred_check_branch
    %10 = sbr.rel (0) target = $region9
  $region8: #{positional_encoder.1} parent=0 // pred_region
    _
  $region9: #{positional_encoder.1} parent=0 // pred_fallthru
    _
  %v11 = vld [vmem:[%s0] sm:$0xff]
  %v12 = vld [vmem:[%s1] sm:$0xf]
  %v14 = vrot.slane %v12, 4
  %vm16 = vcmask 1043456
  %v17 = vsel %vm16, %v12, %v14
  %v18 = vmul.f32 %v11, 5.656854
  %v19 = vadd.f32 %v18, %v17
  %vm20 = vcmask 523264
  %21 = vst.msk [vmem:[%s2] sm:$0xff] %vm20, %v19
  // Predicated region
  $region10: #{positional_encoder.1} parent=0 // pred_check
    _
  $region11: #{positional_encoder.1} parent=0 // pred_check_branch
    %23 = sbr.rel (0) target = $region13
  $region12: #{positional_encoder.1} parent=0 // pred_region
    _
  $region13: #{positional_encoder.1} parent=0 // pred_fallthru
    _
  // Predicated region
  $region14: #{positional_encoder.1} parent=0 // pred_check
    _
  $region15: #{positional_encoder.1} parent=0 // pred_check_branch
    %25 = sbr.rel (0) target = $region17
  $region16: #{positional_encoder.1} parent=0 // pred_region
    _
  $region17: #{positional_encoder.1} parent=0 // pred_fallthru
    _

</llo_original>
